<compile_context>
chip_gen: v7x
topology: tpu7x:2x2x1
jax: 0.10.0
libtpu: 0.0.40
codegen_flags: <defaults>
</compile_context>

<pallas_src>
import math
from functools import partial

import jax
import jax.numpy as jnp
from jax.experimental import pallas as pl
from jax.experimental.pallas import tpu as pltpu

EPS = 1e-08


def _pick_batch_block(b):
    """Images per grid step: amortize per-step overhead for large B, but keep
    >= 2 grid steps so megacore / v7x's 2 TensorCores both get parallel work."""
    if b < 4:
        return 1
    for bb in (8, 4, 2):
        if b % bb == 0 and b // bb >= 2:
            return bb
    return 1


def _conv2d_mod_kernel(scale_ref, mask_ref, x_ref, w_ref, o_ref, xpad_ref, *,
                       H, W, C, O, K, pad, bb, demod, mxu_dtype):
    # scale_ref: (bb, 1, K*K*C) f32      per-image (y + 1), pre-tiled over taps
    # mask_ref : (K, H*W)                per-kx column-validity masks
    # x_ref    : (bb, C, H*W)            images, spatial dims pre-flattened
    # w_ref    : (O, K*K*C)              shared weight (resident tile)
    # o_ref    : (bb, O, H*W)            output, H*W (lane-dense) minor axis
    # xpad_ref : (bb, C, H*W + 2*S)      VMEM scratch with zero halo S=pad*(W+1)
    HW = H * W
    S = pad * W + pad

    # In-kernel "same" padding: zero halo + interior copy.  Re-zeroed every
    # step so correctness does not depend on which core ran step 0 when the
    # parallel grid axis is sharded across TensorCores.
    xpad_ref[...] = jnp.zeros_like(xpad_ref)
    xpad_ref[:, :, S:S + HW] = x_ref[...]

    w_f32 = w_ref[...].astype(jnp.float32)         # (O, K*K*C)
    scale = scale_ref[...].astype(jnp.float32)     # (bb, 1, K*K*C)
    masks = mask_ref[...]                          # (K, H*W)

    for n in range(bb):                            # small, fully unrolled
        # --- modulate / demodulate in f32 (v5e has no bf16 VPU/EUP path) ---
        wmod = w_f32 * scale[n]                    # (O, K*K*C)
        if demod:
            d = jax.lax.rsqrt(jnp.sum(wmod * wmod, axis=1, keepdims=True) + EPS)
            wmod = wmod * d

        # --- im2col via the flat-shift trick: tap (ky, kx) is a static lane
        #     slice of the zero-haloed flat image; the mask kills columns that
        #     wrapped across a row boundary.  No in-kernel reshapes. ---
        taps = []
        for ky in range(K):
            for kx in range(K):
                start = S + (ky - pad) * W + (kx - pad)        # always >= 0
                win = xpad_ref[n, :, start:start + HW]         # (C, H*W)
                taps.append(win * masks[kx:kx + 1, :])
        patches = jnp.concatenate(taps, axis=0)                # (K*K*C, H*W)

        # --- single fused MXU contraction over K*K*C (instead of K*K tiny
        #     dots of contraction C); result is lane-dense for the store. ---
        acc = jnp.dot(wmod.astype(mxu_dtype), patches.astype(mxu_dtype),
                      preferred_element_type=jnp.float32)      # (O, H*W) f32
        o_ref[n] = acc.astype(o_ref.dtype)


def conv2d_mod(x, y, weight, *, demod=True, stride=1, dilation=1,
               batch_block=None, mxu_dtype=None):
    """x: (B, Cin, H, W), y: (B, Cin), weight: (Cout, Cin, K, K) -> (B, Cout, H, W).

    Matches the PyTorch Conv2DMod forward for stride=1, dilation=1, odd K.
    Pass mxu_dtype=jnp.bfloat16 on v6e/v7x for 2x MXU rate (f32 accumulation).
    """
    # TODO(synk): only stride=1, dilation=1 (the module defaults) are implemented.
    assert stride == 1 and dilation == 1
    b, c, h, w = x.shape
    o, c_w, k, k2 = weight.shape
    assert c_w == c and k == k2
    # Even K would need asymmetric padding; the halo construction assumes odd K.
    assert k % 2 == 1, "Conv2DMod Pallas kernel requires an odd kernel size"

    pad = ((h - 1) * (stride - 1) + dilation * (k - 1)) // 2
    hw = h * w
    kkc = k * k * c
    halo = pad * w + pad

    if mxu_dtype is None:
        mxu_dtype = x.dtype
    bb = _pick_batch_block(b) if batch_block is None else batch_block
    assert b % bb == 0

    # Wrapper-side prep: metadata-only reshape of x, plus tiny constant tensors.
    x_flat = x.reshape(b, c, hw)                                    # free
    w_flat = jnp.transpose(weight, (0, 2, 3, 1)).reshape(o, kkc)    # (O, K*K*C)
    scale = jnp.tile((y + 1.0).astype(jnp.float32), (1, k * k))[:, None, :]
    col = jnp.arange(hw, dtype=jnp.int32) % w
    masks = jnp.stack(
        [(col >= pad - kx) & (col < w + pad - kx) for kx in range(k)],
        axis=0).astype(x.dtype)                                     # (K, H*W)

    kern = partial(_conv2d_mod_kernel, H=h, W=w, C=c, O=o, K=k, pad=pad,
                   bb=bb, demod=demod, mxu_dtype=mxu_dtype)

    # TODO(synk): at production StyleGAN2 sizes (C=O~512, H=W~64) add H-row and
    # Cout grid tiling, a VMEM-scratch accumulator, and an explicit
    # vmem_limit_bytes so blocks fit v7x's smaller VMEM.
    out_flat = pl.pallas_call(
        kern,
        out_shape=jax.ShapeDtypeStruct((b, o, hw), x.dtype),
        grid=(b // bb,),
        in_specs=[
            pl.BlockSpec((bb, 1, kkc), lambda i: (i, 0, 0)),   # scale
            pl.BlockSpec((k, hw), lambda i: (0, 0)),           # masks (resident)
            pl.BlockSpec((bb, c, hw), lambda i: (i, 0, 0)),    # x
            pl.BlockSpec((o, kkc), lambda i: (0, 0)),          # weight (resident)
        ],
        out_specs=pl.BlockSpec((bb, o, hw), lambda i: (i, 0, 0)),
        scratch_shapes=[pltpu.VMEM((bb, c, hw + 2 * halo), x.dtype)],
        compiler_params=pltpu.CompilerParams(
            dimension_semantics=("parallel",)),
    )(scale, masks, x_flat, w_flat)

    return out_flat.reshape(b, o, h, w)


def conv2d_mod_ref(x, y, weight, *, demod=True):
    """Pure-JAX reference matching the PyTorch forward (stride=1, dilation=1)."""
    b = x.shape[0]
    k = weight.shape[-1]
    pad = (k - 1) // 2
    w1 = y[:, None, :, None, None]
    w2 = weight[None]
    ws = w2 * (w1 + 1.0)
    if demod:
        d = jax.lax.rsqrt(jnp.sum(ws ** 2, axis=(2, 3, 4), keepdims=True) + EPS)
        ws = ws * d
    outs = []
    for i in range(b):
        outs.append(
            jax.lax.conv_general_dilated(
                x[i:i + 1], ws[i], window_strides=(1, 1),
                padding=((pad, pad), (pad, pad)),
                dimension_numbers=("NCHW", "OIHW", "NCHW"),
            )
        )
    return jnp.concatenate(outs, axis=0)


if __name__ == "__main__":
    # Module config: in_chan=4, out_chan=8, kernel=3, demod=True, stride=1, dilation=1
    b, in_chan, out_chan, kernel, h, w = 2, 4, 8, 3, 16, 16

    key = jax.random.PRNGKey(0)
    k_w, k_x, k_y = jax.random.split(key, 3)

    # kaiming_normal_(a=0, mode='fan_in', nonlinearity='leaky_relu'):
    # gain = sqrt(2); fan_in = in_chan * kernel * kernel
    fan_in = in_chan * kernel * kernel
    std = math.sqrt(2.0) / math.sqrt(fan_in)
    weight = jax.random.normal(k_w, (out_chan, in_chan, kernel, kernel),
                               dtype=jnp.float32) * std

    x = jax.random.normal(k_x, (b, in_chan, h, w), dtype=jnp.float32)
    y = jax.random.normal(k_y, (b, in_chan), dtype=jnp.float32)

    ref = conv2d_mod_ref(x, y, weight, demod=True)

    # f32-operand path (tolerance allows for TPU matmul pass decomposition).
    out = jax.block_until_ready(conv2d_mod(x, y, weight, demod=True))
    assert out.shape == (b, out_chan, h, w)
    assert jnp.allclose(out, ref, rtol=2e-2, atol=2e-2), "f32 path mismatch vs reference"

    # bf16 MXU-operand path (recommended on v6e/v7x); mod/demod math stays f32.
    out_bf16 = jax.block_until_ready(
        conv2d_mod(x, y, weight, demod=True, mxu_dtype=jnp.bfloat16))
    assert jnp.allclose(out_bf16, ref, rtol=1e-1, atol=1e-1), "bf16 path mismatch vs reference"

    print("KERNEL_OK")
</pallas_src>

<mosaic_0001>
module attributes {stable_mosaic.version = 11 : i64} {
  func.func @_conv2d_mod_kernel(%arg0: i32, %arg1: memref<1x1x36xf32, #tpu.memory_space<vmem>>, %arg2: memref<3x256xf32, #tpu.memory_space<vmem>>, %arg3: memref<1x4x256xf32, #tpu.memory_space<vmem>>, %arg4: memref<8x36xf32, #tpu.memory_space<vmem>>, %arg5: memref<1x8x256xf32, #tpu.memory_space<vmem>>, %arg6: memref<1x4x290xf32, #tpu.memory_space<vmem>>) attributes {dimension_semantics = [#tpu.dimension_semantics<parallel>], iteration_bounds = array<i64: 2>, scalar_prefetch = 0 : i64, scratch_operands = 1 : i64, tpu.core_type = #tpu.core_type<tc>, window_params = [{transform_indices = @transform_0, window_bounds = array<i64: 1, 1, 36>}, {pipeline_mode = #tpu.pipeline_mode<synchronous>, transform_indices = @transform_1, window_bounds = array<i64: 3, 256>}, {transform_indices = @transform_2, window_bounds = array<i64: 1, 4, 256>}, {pipeline_mode = #tpu.pipeline_mode<synchronous>, transform_indices = @transform_3, window_bounds = array<i64: 8, 36>}, {transform_indices = @transform_4, window_bounds = array<i64: 1, 8, 256>}]} {
    %cst = arith.constant 0.000000e+00 : f32
    %0 = vector.broadcast %cst : f32 to vector<1x4x290xf32>
    %c0 = arith.constant 0 : index
    %c0_0 = arith.constant 0 : index
    %c0_1 = arith.constant 0 : index
    %1 = vector.load %arg6[%c0, %c0_0, %c0_1] : memref<1x4x290xf32, #tpu.memory_space<vmem>>, vector<1x4x290xf32>
    tpu.vector_store %arg6[%c0, %c0_0, %c0_1], %0 {strides = array<i32>} : memref<1x4x290xf32, #tpu.memory_space<vmem>>, vector<1x4x290xf32>,
    %c0_2 = arith.constant 0 : index
    %c0_3 = arith.constant 0 : index
    %c0_4 = arith.constant 0 : index
    %2 = vector.load %arg3[%c0_2, %c0_3, %c0_4] : memref<1x4x256xf32, #tpu.memory_space<vmem>>, vector<1x4x256xf32>
    %c0_5 = arith.constant 0 : index
    %c0_6 = arith.constant 0 : index
    %c17 = arith.constant 17 : index
    %3 = vector.load %arg6[%c0_5, %c0_6, %c17] : memref<1x4x290xf32, #tpu.memory_space<vmem>>, vector<1x4x256xf32>
    tpu.vector_store %arg6[%c0_5, %c0_6, %c17], %2 {strides = array<i32>} : memref<1x4x290xf32, #tpu.memory_space<vmem>>, vector<1x4x256xf32>,
    %c0_7 = arith.constant 0 : index
    %c0_8 = arith.constant 0 : index
    %4 = vector.load %arg4[%c0_7, %c0_8] : memref<8x36xf32, #tpu.memory_space<vmem>>, vector<8x36xf32>
    %c0_9 = arith.constant 0 : index
    %c0_10 = arith.constant 0 : index
    %c0_11 = arith.constant 0 : index
    %5 = vector.load %arg1[%c0_9, %c0_10, %c0_11] : memref<1x1x36xf32, #tpu.memory_space<vmem>>, vector<1x1x36xf32>
    %c0_12 = arith.constant 0 : index
    %c0_13 = arith.constant 0 : index
    %6 = vector.load %arg2[%c0_12, %c0_13] : memref<3x256xf32, #tpu.memory_space<vmem>>, vector<3x256xf32>
    %7 = vector.shape_cast %5 : vector<1x1x36xf32> to vector<1x36xf32>
    %8 = vector.broadcast %7 : vector<1x36xf32> to vector<8x36xf32>
    %9 = arith.mulf %4, %8 : vector<8x36xf32>
    %10 = arith.mulf %9, %9 : vector<8x36xf32>
    %cst_14 = arith.constant dense<0.000000e+00> : vector<8xf32>
    %11 = vector.multi_reduction <add>, %10, %cst_14 [1] : vector<8x36xf32> to vector<8xf32>
    %12 = vector.shape_cast %11 : vector<8xf32> to vector<8x1xf32>
    %cst_15 = arith.constant 9.99999993E-9 : f32
    %13 = vector.broadcast %cst_15 : f32 to vector<8x1xf32>
    %14 = arith.addf %12, %13 : vector<8x1xf32>
    %15 = math.rsqrt %14 : vector<8x1xf32>
    %16 = vector.broadcast %15 : vector<8x1xf32> to vector<8x36xf32>
    %17 = arith.mulf %9, %16 : vector<8x36xf32>
    %c0_16 = arith.constant 0 : index
    %c0_17 = arith.constant 0 : index
    %c0_18 = arith.constant 0 : index
    %18 = vector.load %arg6[%c0_16, %c0_17, %c0_18] : memref<1x4x290xf32, #tpu.memory_space<vmem>>, vector<1x4x256xf32>
    %19 = vector.shape_cast %18 : vector<1x4x256xf32> to vector<4x256xf32>
    %20 = vector.extract_strided_slice %6 {offsets = [0, 0], sizes = [1, 256], strides = [1, 1]} : vector<3x256xf32> to vector<1x256xf32>
    %21 = vector.broadcast %20 : vector<1x256xf32> to vector<4x256xf32>
    %22 = arith.mulf %19, %21 : vector<4x256xf32>
    %c0_19 = arith.constant 0 : index
    %c0_20 = arith.constant 0 : index
    %c1 = arith.constant 1 : index
    %23 = vector.load %arg6[%c0_19, %c0_20, %c1] : memref<1x4x290xf32, #tpu.memory_space<vmem>>, vector<1x4x256xf32>
    %24 = vector.shape_cast %23 : vector<1x4x256xf32> to vector<4x256xf32>
    %25 = vector.extract_strided_slice %6 {offsets = [1, 0], sizes = [1, 256], strides = [1, 1]} : vector<3x256xf32> to vector<1x256xf32>
    %26 = vector.broadcast %25 : vector<1x256xf32> to vector<4x256xf32>
    %27 = arith.mulf %24, %26 : vector<4x256xf32>
    %c0_21 = arith.constant 0 : index
    %c0_22 = arith.constant 0 : index
    %c2 = arith.constant 2 : index
    %28 = vector.load %arg6[%c0_21, %c0_22, %c2] : memref<1x4x290xf32, #tpu.memory_space<vmem>>, vector<1x4x256xf32>
    %29 = vector.shape_cast %28 : vector<1x4x256xf32> to vector<4x256xf32>
    %30 = vector.extract_strided_slice %6 {offsets = [2, 0], sizes = [1, 256], strides = [1, 1]} : vector<3x256xf32> to vector<1x256xf32>
    %31 = vector.broadcast %30 : vector<1x256xf32> to vector<4x256xf32>
    %32 = arith.mulf %29, %31 : vector<4x256xf32>
    %c0_23 = arith.constant 0 : index
    %c0_24 = arith.constant 0 : index
    %c16 = arith.constant 16 : index
    %33 = vector.load %arg6[%c0_23, %c0_24, %c16] : memref<1x4x290xf32, #tpu.memory_space<vmem>>, vector<1x4x256xf32>
    %34 = vector.shape_cast %33 : vector<1x4x256xf32> to vector<4x256xf32>
    %35 = vector.extract_strided_slice %6 {offsets = [0, 0], sizes = [1, 256], strides = [1, 1]} : vector<3x256xf32> to vector<1x256xf32>
    %36 = vector.broadcast %35 : vector<1x256xf32> to vector<4x256xf32>
    %37 = arith.mulf %34, %36 : vector<4x256xf32>
    %c0_25 = arith.constant 0 : index
    %c0_26 = arith.constant 0 : index
    %c17_27 = arith.constant 17 : index
    %38 = vector.load %arg6[%c0_25, %c0_26, %c17_27] : memref<1x4x290xf32, #tpu.memory_space<vmem>>, vector<1x4x256xf32>
    %39 = vector.shape_cast %38 : vector<1x4x256xf32> to vector<4x256xf32>
    %40 = vector.extract_strided_slice %6 {offsets = [1, 0], sizes = [1, 256], strides = [1, 1]} : vector<3x256xf32> to vector<1x256xf32>
    %41 = vector.broadcast %40 : vector<1x256xf32> to vector<4x256xf32>
    %42 = arith.mulf %39, %41 : vector<4x256xf32>
    %c0_28 = arith.constant 0 : index
    %c0_29 = arith.constant 0 : index
    %c18 = arith.constant 18 : index
    %43 = vector.load %arg6[%c0_28, %c0_29, %c18] : memref<1x4x290xf32, #tpu.memory_space<vmem>>, vector<1x4x256xf32>
    %44 = vector.shape_cast %43 : vector<1x4x256xf32> to vector<4x256xf32>
    %45 = vector.extract_strided_slice %6 {offsets = [2, 0], sizes = [1, 256], strides = [1, 1]} : vector<3x256xf32> to vector<1x256xf32>
    %46 = vector.broadcast %45 : vector<1x256xf32> to vector<4x256xf32>
    %47 = arith.mulf %44, %46 : vector<4x256xf32>
    %c0_30 = arith.constant 0 : index
    %c0_31 = arith.constant 0 : index
    %c32 = arith.constant 32 : index
    %48 = vector.load %arg6[%c0_30, %c0_31, %c32] : memref<1x4x290xf32, #tpu.memory_space<vmem>>, vector<1x4x256xf32>
    %49 = vector.shape_cast %48 : vector<1x4x256xf32> to vector<4x256xf32>
    %50 = vector.extract_strided_slice %6 {offsets = [0, 0], sizes = [1, 256], strides = [1, 1]} : vector<3x256xf32> to vector<1x256xf32>
    %51 = vector.broadcast %50 : vector<1x256xf32> to vector<4x256xf32>
    %52 = arith.mulf %49, %51 : vector<4x256xf32>
    %c0_32 = arith.constant 0 : index
    %c0_33 = arith.constant 0 : index
    %c33 = arith.constant 33 : index
    %53 = vector.load %arg6[%c0_32, %c0_33, %c33] : memref<1x4x290xf32, #tpu.memory_space<vmem>>, vector<1x4x256xf32>
    %54 = vector.shape_cast %53 : vector<1x4x256xf32> to vector<4x256xf32>
    %55 = vector.extract_strided_slice %6 {offsets = [1, 0], sizes = [1, 256], strides = [1, 1]} : vector<3x256xf32> to vector<1x256xf32>
    %56 = vector.broadcast %55 : vector<1x256xf32> to vector<4x256xf32>
    %57 = arith.mulf %54, %56 : vector<4x256xf32>
    %c0_34 = arith.constant 0 : index
    %c0_35 = arith.constant 0 : index
    %c34 = arith.constant 34 : index
    %58 = vector.load %arg6[%c0_34, %c0_35, %c34] : memref<1x4x290xf32, #tpu.memory_space<vmem>>, vector<1x4x256xf32>
    %59 = vector.shape_cast %58 : vector<1x4x256xf32> to vector<4x256xf32>
    %60 = vector.extract_strided_slice %6 {offsets = [2, 0], sizes = [1, 256], strides = [1, 1]} : vector<3x256xf32> to vector<1x256xf32>
    %61 = vector.broadcast %60 : vector<1x256xf32> to vector<4x256xf32>
    %62 = arith.mulf %59, %61 : vector<4x256xf32>
    %63 = tpu.concatenate %22, %27, %32, %37, %42, %47, %52, %57, %62 in 0 : vector<4x256xf32>, vector<4x256xf32>, vector<4x256xf32>, vector<4x256xf32>, vector<4x256xf32>, vector<4x256xf32>, vector<4x256xf32>, vector<4x256xf32>, vector<4x256xf32> -> vector<36x256xf32>
    %cst_36 = arith.constant dense<0.000000e+00> : vector<8x256xf32>
    %64 = tpu.matmul %17, %63, %cst_36 {dimension_numbers = #tpu.dot_dimension_numbers<[1], [0], [0], [1], [0, 0, 1, 1], [], []>} : vector<8x36xf32>, vector<36x256xf32>, vector<8x256xf32> -> vector<8x256xf32>
    %c0_37 = arith.constant 0 : index
    %c0_38 = arith.constant 0 : index
    %c0_39 = arith.constant 0 : index
    %65 = vector.load %arg5[%c0_37, %c0_38, %c0_39] : memref<1x8x256xf32, #tpu.memory_space<vmem>>, vector<1x8x256xf32>
    %66 = vector.shape_cast %65 : vector<1x8x256xf32> to vector<8x256xf32>
    %67 = vector.shape_cast %64 : vector<8x256xf32> to vector<1x8x256xf32>
    tpu.vector_store %arg5[%c0_37, %c0_38, %c0_39], %67 {strides = array<i32>} : memref<1x8x256xf32, #tpu.memory_space<vmem>>, vector<1x8x256xf32>,
    return
  }
  func.func @transform_0(%arg0: i32) -> (i32, i32, i32) {
    %c0_i32 = arith.constant 0 : i32
    %c0_i32_0 = arith.constant 0 : i32
    %c0_i32_1 = arith.constant 0 : i32
    return %arg0, %c0_i32, %c0_i32_0 : i32, i32, i32
  }
  func.func @transform_1(%arg0: i32) -> (i32, i32) {
    %c0_i32 = arith.constant 0 : i32
    %c0_i32_0 = arith.constant 0 : i32
    %c0_i32_1 = arith.constant 0 : i32
    return %c0_i32, %c0_i32_0 : i32, i32
  }
  func.func @transform_2(%arg0: i32) -> (i32, i32, i32) {
    %c0_i32 = arith.constant 0 : i32
    %c0_i32_0 = arith.constant 0 : i32
    %c0_i32_1 = arith.constant 0 : i32
    return %arg0, %c0_i32, %c0_i32_0 : i32, i32, i32
  }
  func.func @transform_3(%arg0: i32) -> (i32, i32) {
    %c0_i32 = arith.constant 0 : i32
    %c0_i32_0 = arith.constant 0 : i32
    %c0_i32_1 = arith.constant 0 : i32
    return %c0_i32, %c0_i32_0 : i32, i32
  }
  func.func @transform_4(%arg0: i32) -> (i32, i32, i32) {
    %c0_i32 = arith.constant 0 : i32
    %c0_i32_0 = arith.constant 0 : i32
    %c0_i32_1 = arith.constant 0 : i32
    return %arg0, %c0_i32, %c0_i32_0 : i32, i32, i32
  }
}

</mosaic_0001>

<llo_original>
// kernel: tpu_custom_call.1
$region0: #{tpu_custom_call.1}
  #allocation0 [shape = 'u32[]', space=smem, size = 0x4, offset = 0x4, fixed_abs, tag = 'smem constant byte address 0x4 - core index']
  #allocation1 [shape = 'u32[144,128]{1,0:T(1,128)}', space=vmem, size = 0x12000, scoped, tag = 'internal scratch']
  #allocation2 [shape = 'f32[1,4,290]{2,1,0:T(4,128)}', space=vmem, size = 0x1800, scoped, tag = 'scratch operand']
  %s0 = inlined_call_operand.hbm [shape: f32[2,1,36], index: 0, kind: input, shape index: {}]
  %s1 = inlined_call_operand.hbm [shape: f32[3,256], index: 1, kind: input, shape index: {}]
  %s2 = inlined_call_operand.hbm [shape: f32[2,4,256], index: 2, kind: input, shape index: {}]
  %s3 = inlined_call_operand.vmem [shape: f32[8,36], index: 3, kind: input, shape index: {}]
  %s4 = inlined_call_operand.hbm [shape: f32[2,8,256], index: 4, kind: output, shape index: {}]
  %s5 = sld [smem:[#allocation0]]
  $region61: #{tpu_custom_call.1} parent=0
    _
  %s7 = ssub.s32 1, %s5
  %s8 = scalar_select 0, %s7, %s5
  $region1: #{tpu_custom_call.1} parent=0
    #allocation3 [shape = 'u8[1024]{0}', space=vmem, size = 0x400, scoped, tag = 'input window, operand 0']
    #allocation4 [shape = 's32[2]{0}', space=sflag, size = 0x8, scoped, tag = 'scoped memory for tpu_custom_call.1']
    #allocation5 [shape = 's32[2]{0}', space=sflag, size = 0x8, scoped, tag = 'scoped memory for tpu_custom_call.1']
    #allocation6 [shape = 'u8[4096]{0}', space=vmem, size = 0x1000, scoped, tag = 'input window, operand 1, single buffered']
    #allocation7 [shape = 's32[1]{0}', space=sflag, size = 0x4, scoped, tag = 'scoped memory for tpu_custom_call.1']
    #allocation8 [shape = 'u8[8192]{0}', space=vmem, size = 0x2000, scoped, tag = 'input window, operand 2']
    #allocation9 [shape = 'u8[16384]{0}', space=vmem, size = 0x4000, scoped, tag = 'output window, operand 0']
    %9 = vsyncpa [#allocation4], 0
    %s10 = scalar_lea.sflag [#allocation4], 1
    %11 = vsyncpa %s10, 0
    %12 = vsyncpa [#allocation7], 0
    %13 = vsyncpa [#allocation5], 0
    %s14 = scalar_lea.sflag [#allocation5], 1
    %15 = vsyncpa %s14, 0
    loop: start=0, step=1, limit=4
    $region2: #{tpu_custom_call.1} parent=1 // loop_pre_header
      _
    $region3: #{tpu_custom_call.1} parent=1 // loop_header
      %s17 = sphi 0, %s21
      %p18 = scmp.ge.s32.totalorder %s17, 4
      %s27 = sphi 0, %s29
      %s30 = sphi 0, %s27
      %s31 = sphi 0, %s30
      %s47 = sphi 0, %s31
      %s51 = sphi 0, %s51
      %s53 = sphi 0, %s51
      %s54 = sphi 0, %s53
      %s68 = sphi 0, %s54
      %s74 = sphi 0, %s76
      %s77 = sphi 0, %s74
      %s78 = sphi 0, %s77
      %s94 = sphi 0, %s78
      %s98 = sphi 0, %s98
      %s100 = sphi 0, %s98
      %s101 = sphi 0, %s100
      %s115 = sphi 0, %s101
      %s121 = sphi 0, %s123
      %s124 = sphi 0, %s121
      %s125 = sphi 0, %s124
      %s141 = sphi 0, %s125
    $region4: #{tpu_custom_call.1} parent=1 // loop_header_branch
      %20 = sbr.rel (%p18) target = $region8
    $region5: #{tpu_custom_call.1} parent=1 // loop_body
      %s22 = ssub.s32 %s17, 1
      %s23 = ssub.s32 %s17, 2
      %s24 = sadd.s32 %s17, 1
      %s25 = ssub.s32 %s17, %s24
      %p26 = scmp.eq.s32.totalorder %s25, 0
      %s28 = sadd.s32 %s27, 1
      %s29 = scalar_select %p26, %s27, %s28
      %p32 = pneg %p26
      %p33 = scmp.eq.s32.totalorder %s17, 1
      %p34 = por %p32, %p33
      %p35 = scmp.ne.s32.totalorder %s27, %s30
      %p36 = scmp.eq.s32.totalorder %s17, 0
      %p37 = por %p35, %p36
      %p38 = scmp.ne.s32.totalorder %s27, %s30
      %p39 = scmp.eq.s32.totalorder %s22, 1
      %p40 = por %p38, %p39
      %p41 = scmp.ne.s32.totalorder %s30, %s31
      %p42 = scmp.eq.s32.totalorder %s22, 0
      %p43 = por %p41, %p42
      %p44 = scmp.ne.s32.totalorder %s30, %s31
      %p45 = scmp.eq.s32.totalorder %s23, 1
      %p46 = por %p44, %p45
      %p48 = scmp.ne.s32.totalorder %s31, %s47
      %p49 = scmp.eq.s32.totalorder %s23, 0
      %p50 = por %p48, %p49
      %s52 = sadd.s32 %s51, 1
      %p55 = scmp.eq.s32.totalorder %s17, 1
      %p56 = scmp.ne.s32.totalorder %s51, %s53
      %p57 = scmp.eq.s32.totalorder %s17, 0
      %p58 = por %p56, %p57
      %p59 = scmp.ne.s32.totalorder %s51, %s53
      %p60 = scmp.eq.s32.totalorder %s22, 1
      %p61 = por %p59, %p60
      %p62 = scmp.ne.s32.totalorder %s53, %s54
      %p63 = scmp.eq.s32.totalorder %s22, 0
      %p64 = por %p62, %p63
      %p65 = scmp.ne.s32.totalorder %s53, %s54
      %p66 = scmp.eq.s32.totalorder %s23, 1
      %p67 = por %p65, %p66
      %p69 = scmp.ne.s32.totalorder %s54, %s68
      %p70 = scmp.eq.s32.totalorder %s23, 0
      %p71 = por %p69, %p70
      %s72 = ssub.s32 %s17, %s24
      %p73 = scmp.eq.s32.totalorder %s72, 0
      %s75 = sadd.s32 %s74, 1
      %s76 = scalar_select %p73, %s74, %s75
      %p79 = pneg %p73
      %p80 = scmp.eq.s32.totalorder %s17, 1
      %p81 = por %p79, %p80
      %p82 = scmp.ne.s32.totalorder %s74, %s77
      %p83 = scmp.eq.s32.totalorder %s17, 0
      %p84 = por %p82, %p83
      %p85 = scmp.ne.s32.totalorder %s74, %s77
      %p86 = scmp.eq.s32.totalorder %s22, 1
      %p87 = por %p85, %p86
      %p88 = scmp.ne.s32.totalorder %s77, %s78
      %p89 = scmp.eq.s32.totalorder %s22, 0
      %p90 = por %p88, %p89
      %p91 = scmp.ne.s32.totalorder %s77, %s78
      %p92 = scmp.eq.s32.totalorder %s23, 1
      %p93 = por %p91, %p92
      %p95 = scmp.ne.s32.totalorder %s78, %s94
      %p96 = scmp.eq.s32.totalorder %s23, 0
      %p97 = por %p95, %p96
      %s99 = sadd.s32 %s98, 1
      %p102 = scmp.eq.s32.totalorder %s17, 1
      %p103 = scmp.ne.s32.totalorder %s98, %s100
      %p104 = scmp.eq.s32.totalorder %s17, 0
      %p105 = por %p103, %p104
      %p106 = scmp.ne.s32.totalorder %s98, %s100
      %p107 = scmp.eq.s32.totalorder %s22, 1
      %p108 = por %p106, %p107
      %p109 = scmp.ne.s32.totalorder %s100, %s101
      %p110 = scmp.eq.s32.totalorder %s22, 0
      %p111 = por %p109, %p110
      %p112 = scmp.ne.s32.totalorder %s100, %s101
      %p113 = scmp.eq.s32.totalorder %s23, 1
      %p114 = por %p112, %p113
      %p116 = scmp.ne.s32.totalorder %s101, %s115
      %p117 = scmp.eq.s32.totalorder %s23, 0
      %p118 = por %p116, %p117
      %s119 = ssub.s32 %s17, %s24
      %p120 = scmp.eq.s32.totalorder %s119, 0
      %s122 = sadd.s32 %s121, 1
      %s123 = scalar_select %p120, %s121, %s122
      %p126 = pneg %p120
      %p127 = scmp.eq.s32.totalorder %s17, 1
      %p128 = por %p126, %p127
      %p129 = scmp.ne.s32.totalorder %s121, %s124
      %p130 = scmp.eq.s32.totalorder %s17, 0
      %p131 = por %p129, %p130
      %p132 = scmp.ne.s32.totalorder %s121, %s124
      %p133 = scmp.eq.s32.totalorder %s22, 1
      %p134 = por %p132, %p133
      %p135 = scmp.ne.s32.totalorder %s124, %s125
      %p136 = scmp.eq.s32.totalorder %s22, 0
      %p137 = por %p135, %p136
      %p138 = scmp.ne.s32.totalorder %s124, %s125
      %p139 = scmp.eq.s32.totalorder %s23, 1
      %p140 = por %p138, %p139
      %p142 = scmp.ne.s32.totalorder %s125, %s141
      %p143 = scmp.eq.s32.totalorder %s23, 0
      %p144 = por %p142, %p143
      %p145 = scmp.le.s32.totalorder 1, %s17
      %p146 = scmp.lt.s32.totalorder %s17, 3
      %p147 = pnand %p145, %p146
      %p148 = pneg %p147
      // Predicated region
      $region9: #{tpu_custom_call.1} parent=5 // pred_check
        _
      $region10: #{tpu_custom_call.1} parent=5 // pred_check_branch
        %150 = sbr.rel (%p147) target = $region12
      $region11: #{tpu_custom_call.1} parent=5 // pred_region
        %s151 = ssub.s32 %s17, 1
        // Predicated region
        $region13: #{tpu_custom_call.1} parent=11 // pred_check
          %p152 = pneg %p64
        $region14: #{tpu_custom_call.1} parent=11 // pred_check_branch
          %154 = sbr.rel (%p152) target = $region16
        $region15: #{tpu_custom_call.1} parent=11 // pred_region
          %s156 = ssub.s32 128, 128
          %157 = vsyncadd [#allocation7], %s156
          %s159 = sshll.u32 [#allocation6], 4
          %s160 = int_to_ptr.vmem [resolvable:$true] %s159
          %162 = dma.hbm_to_vmem [thread:$0]  %s1, 128, %s160, [#allocation7]
        $region16: #{tpu_custom_call.1} parent=11 // pred_fallthru
          _
        // Predicated region
        $region17: #{tpu_custom_call.1} parent=11 // pred_check
          %p163 = pneg %p111
        $region18: #{tpu_custom_call.1} parent=11 // pred_check_branch
          %165 = sbr.rel (%p163) target = $region20
        $region19: #{tpu_custom_call.1} parent=11 // pred_region
          _
        $region20: #{tpu_custom_call.1} parent=11 // pred_fallthru
          _
      $region12: #{tpu_custom_call.1} parent=5 // pred_fallthru
        _
      %p166 = scmp.lt.s32.totalorder %s17, 2
      // Predicated region
      $region21: #{tpu_custom_call.1} parent=5 // pred_check
        %p167 = pneg %p166
      $region22: #{tpu_custom_call.1} parent=5 // pred_check_branch
        %169 = sbr.rel (%p167) target = $region24
      $region23: #{tpu_custom_call.1} parent=5 // pred_region
        // Predicated region
        $region25: #{tpu_custom_call.1} parent=23 // pred_check
          %p170 = pneg %p37
        $region26: #{tpu_custom_call.1} parent=23 // pred_check_branch
          %172 = sbr.rel (%p170) target = $region28
        $region27: #{tpu_custom_call.1} parent=23 // pred_region
          %s173 = sand.u32 %s17, 1
          %s174 = scalar_lea.sflag [#allocation4], %s173
          %s175 = sand.u32 %s27, 1
          %s176 = scalar_lea.vmem [#allocation3], %s175
          %s178 = ssub.s32 16, 16
          %179 = vsyncadd %s174, %s178
          %s180 = smul.addr %s17, 16
          %s181 = scalar_lea.hbm %s0, %s180
          %s183 = sshll.u32 %s176, 4
          %s184 = int_to_ptr.vmem [resolvable:$true] %s183
          %186 = dma.hbm_to_vmem [thread:$0]  %s181, 16, %s184, %s174
        $region28: #{tpu_custom_call.1} parent=23 // pred_fallthru
          _
        // Predicated region
        $region29: #{tpu_custom_call.1} parent=23 // pred_check
          %p187 = pneg %p84
        $region30: #{tpu_custom_call.1} parent=23 // pred_check_branch
          %189 = sbr.rel (%p187) target = $region32
        $region31: #{tpu_custom_call.1} parent=23 // pred_region
          %s190 = sand.u32 %s17, 1
          %s191 = scalar_lea.sflag [#allocation4], %s190
          %s192 = sand.u32 %s74, 1
          %s193 = smul.addr %s192, 8
          %s194 = scalar_lea.vmem [#allocation8], %s193
          %s196 = ssub.s32 128, 128
          %197 = vsyncadd %s191, %s196
          %s198 = smul.addr %s17, 2
          %s199 = smul.addr %s198, 64
          %s200 = scalar_lea.hbm %s2, %s199
          %s202 = sshll.u32 %s194, 4
          %s203 = int_to_ptr.vmem [resolvable:$true] %s202
          %205 = dma.hbm_to_vmem [thread:$0]  %s200, 128, %s203, %s191
        $region32: #{tpu_custom_call.1} parent=23 // pred_fallthru
          _
      $region24: #{tpu_custom_call.1} parent=5 // pred_fallthru
        _
      %p206 = scmp.le.s32.totalorder 1, %s17
      %p207 = scmp.lt.s32.totalorder %s17, 3
      %p208 = pnand %p206, %p207
      %p209 = pneg %p208
      // Predicated region
      $region33: #{tpu_custom_call.1} parent=5 // pred_check
        _
      $region34: #{tpu_custom_call.1} parent=5 // pred_check_branch
        %211 = sbr.rel (%p208) target = $region36
      $region35: #{tpu_custom_call.1} parent=5 // pred_region
        %s212 = ssub.s32 %s17, 1
        %s213 = sand.u32 %s22, 1
        %s214 = scalar_lea.sflag [#allocation4], %s213
        %s215 = sand.u32 %s30, 1
        %s216 = scalar_lea.vmem [#allocation3], %s215
        // Predicated region
        $region37: #{tpu_custom_call.1} parent=35 // pred_check
          %p217 = pneg %p43
        $region38: #{tpu_custom_call.1} parent=35 // pred_check_branch
          %219 = sbr.rel (%p217) target = $region40
        $region39: #{tpu_custom_call.1} parent=35 // pred_region
          %220 = dma.done %s214, 16
        $region40: #{tpu_custom_call.1} parent=35 // pred_fallthru
          _
        // Predicated region
        $region41: #{tpu_custom_call.1} parent=35 // pred_check
          %p221 = pneg %p64
        $region42: #{tpu_custom_call.1} parent=35 // pred_check_branch
          %223 = sbr.rel (%p221) target = $region44
        $region43: #{tpu_custom_call.1} parent=35 // pred_region
          %224 = dma.done [#allocation7], 128
        $region44: #{tpu_custom_call.1} parent=35 // pred_fallthru
          _
        %s225 = sand.u32 %s22, 1
        %s226 = scalar_lea.sflag [#allocation4], %s225
        %s227 = sand.u32 %s77, 1
        %s228 = smul.addr %s227, 8
        %s229 = scalar_lea.vmem [#allocation8], %s228
        // Predicated region
        $region45: #{tpu_custom_call.1} parent=35 // pred_check
          %p230 = pneg %p90
        $region46: #{tpu_custom_call.1} parent=35 // pred_check_branch
          %232 = sbr.rel (%p230) target = $region48
        $region47: #{tpu_custom_call.1} parent=35 // pred_region
          %233 = dma.done %s226, 128
        $region48: #{tpu_custom_call.1} parent=35 // pred_fallthru
          _
        %s234 = sand.u32 %s22, 1
        %s235 = scalar_lea.sflag [#allocation4], %s234
        %s236 = sand.u32 %s30, 1
        %s237 = scalar_lea.vmem [#allocation3], %s236
        %p238 = pneg %p43
        %p239 = pneg %p40
        %p240 = pneg %p64
        %p241 = pneg %p61
        %s242 = sand.u32 %s22, 1
        %s243 = scalar_lea.sflag [#allocation4], %s242
        %s244 = sand.u32 %s77, 1
        %s245 = smul.addr %s244, 8
        %s246 = scalar_lea.vmem [#allocation8], %s245
        %p247 = pneg %p90
        %p248 = pneg %p87
        %p249 = pneg %p111
        %p250 = pneg %p108
        %p251 = pneg %p137
        %p252 = pneg %p134
        %s253 = sand.u32 %s124, 1
        %s254 = scalar_lea.sflag [#allocation5], %s253
        %s255 = sand.u32 %s124, 1
        %s256 = smul.addr %s255, 16
        %s257 = scalar_lea.vmem [#allocation9], %s256
        %258 = vst [vmem:[#allocation2] sm:$0xff] 0.0
        %vm259 = vcmask 273408
        %260 = vst.msk [vmem:[#allocation2 + $0x8] sm:$0xf] %vm259, 0.0
        %v261 = vld [vmem:[%s229] sm:$0xff]
        %263 = vrot.lane.b32.xlu0 %v261, 17
        %v264 = vpop.permute.xlu0 %263
        %v265 = vrot.slane %v264, 4
        %vm266 = vcmask 138240
        %v267 = vsel %vm266, %v265, %v264
        %vm270 = vcmask 1043592
        %vm271 = vcmask 1047556
        %vm272 = vmor %vm271, %vm270
        %273 = vst.msk [vmem:[#allocation2] sm:$0xff] %vm272, %v267
        %vm274 = vcmask 134144
        %275 = vst.msk [vmem:[#allocation2 + $0x8] sm:$0xf] %vm274, %v265
        %v276 = vld [vmem:[%s3] sm:$0xff]
        %v277 = vld [vmem:[%s216] sm:$0x1]
        %v278 = vld [vmem:[#allocation6] sm:$0x77]
        %v280 = vlaneseq
        %v281 = vshrl.u32 %v280, 7
        %v282 = vsub.s32 0, %v281
        %v283 = vrot.slane %v277, %v282
        %v285 = vmul.f32 %v276, %v283
        %v286 = vmul.f32 %v285, %v285
        %vm287 = vcmask 293888
        %v288 = vsel %vm287, %v286, 0.0
        %289 = vadd.xlane.f32.xlu0 %v288
        %v290 = vpop.xlane.xlu0 %289
        %v291 = vadd.f32 %v290, 1e-08
        %v292 = vrsqrt.pop %v291
        %v293 = vmul.f32 %v285, %v292
        %v294 = vld [vmem:[#allocation2] sm:$0xff]
        %v296 = vlaneseq
        %v297 = vshrl.u32 %v296, 7
        %v298 = vsub.s32 0, %v297
        %v299 = vrot.slane %v278, %v298
        %v300 = vlaneseq
        %v301 = vshrl.u32 %v300, 7
        %v302 = vsub.s32 4, %v301
        %v303 = vrot.slane %v278, %v302
        %v306 = vlaneseq
        %v307 = vshrl.u32 %v306, 7
        %v308 = vsub.s32 0, %v307
        %v309 = vrot.slane %v299, %v308
        %v310 = vlaneseq
        %v311 = vshrl.u32 %v310, 7
        %v312 = vsub.s32 0, %v311
        %v313 = vrot.slane %v303, %v312
        %v316 = vcombine.low %v309, %v313
        %v318 = vmul.f32 %v294, %v316
        %v319 = vld [vmem:[#allocation2 + $0x8] sm:$0xf]
        %v320 = vlaneseq
        %v321 = vshrl.u32 %v320, 7
        %v322 = vsub.s32 1, %v321
        %v323 = vrot.slane %v278, %v322
        %v324 = vlaneseq
        %v325 = vshrl.u32 %v324, 7
        %v326 = vsub.s32 5, %v325
        %v327 = vrot.slane %v278, %v326
        %v330 = vlaneseq
        %v331 = vshrl.u32 %v330, 7
        %v332 = vsub.s32 1, %v331
        %v333 = vrot.slane %v323, %v332
        %v334 = vlaneseq
        %v335 = vshrl.u32 %v334, 7
        %v336 = vsub.s32 1, %v335
        %v337 = vrot.slane %v327, %v336
        %v340 = vcombine.low %v333, %v337
        %341 = vrot.lane.b32.xlu0 %v340, 1
        %v342 = vpop.permute.xlu0 %341
        %v343 = vrot.slane %v342, 4
        %vm344 = vcmask 7168
        %v345 = vsel %vm344, %v343, %v342
        %v348 = vmul.f32 %v294, %v345
        %v349 = vmul.f32 %v319, %v343
        %v350 = vlaneseq
        %v351 = vshrl.u32 %v350, 7
        %v352 = vsub.s32 2, %v351
        %v353 = vrot.slane %v278, %v352
        %v354 = vlaneseq
        %v355 = vshrl.u32 %v354, 7
        %v356 = vsub.s32 6, %v355
        %v357 = vrot.slane %v278, %v356
        %v360 = vlaneseq
        %v361 = vshrl.u32 %v360, 7
        %v362 = vsub.s32 2, %v361
        %v363 = vrot.slane %v353, %v362
        %v364 = vlaneseq
        %v365 = vshrl.u32 %v364, 7
        %v366 = vsub.s32 2, %v365
        %v367 = vrot.slane %v357, %v366
        %v370 = vcombine.low %v363, %v367
        %371 = vrot.lane.b32.xlu0 %v370, 2
        %v372 = vpop.permute.xlu0 %371
        %v373 = vrot.slane %v372, 4
        %vm374 = vcmask 15360
        %v375 = vsel %vm374, %v373, %v372
        %v378 = vmul.f32 %v294, %v375
        %v379 = vmul.f32 %v319, %v373
        %380 = vrot.lane.b32.xlu0 %v316, 16
        %v381 = vpop.permute.xlu0 %380
        %v382 = vrot.slane %v381, 4
        %vm383 = vcmask 130048
        %v384 = vsel %vm383, %v382, %v381
        %v387 = vmul.f32 %v294, %v384
        %v388 = vmul.f32 %v319, %v382
        %389 = vrot.lane.b32.xlu0 %v340, 17
        %v390 = vpop.permute.xlu0 %389
        %v391 = vrot.slane %v390, 4
        %v392 = vsel %vm266, %v391, %v390
        %v395 = vmul.f32 %v294, %v392
        %v396 = vmul.f32 %v319, %v391
        %397 = vrot.lane.b32.xlu0 %v370, 18
        %v398 = vpop.permute.xlu0 %397
        %v399 = vrot.slane %v398, 4
        %vm400 = vcmask 146432
        %v401 = vsel %vm400, %v399, %v398
        %v404 = vmul.f32 %v294, %v401
        %v405 = vmul.f32 %v319, %v399
        %406 = vrot.lane.b32.xlu0 %v316, 32
        %v407 = vpop.permute.xlu0 %406
        %v408 = vrot.slane %v407, 4
        %vm409 = vcmask 261120
        %v410 = vsel %vm409, %v408, %v407
        %v413 = vmul.f32 %v294, %v410
        %v414 = vmul.f32 %v319, %v408
        %415 = vrot.lane.b32.xlu0 %v340, 33
        %v416 = vpop.permute.xlu0 %415
        %v417 = vrot.slane %v416, 4
        %vm418 = vcmask 269312
        %v419 = vsel %vm418, %v417, %v416
        %v422 = vmul.f32 %v294, %v419
        %v423 = vmul.f32 %v319, %v417
        %424 = vrot.lane.b32.xlu0 %v370, 34
        %v425 = vpop.permute.xlu0 %424
        %v426 = vrot.slane %v425, 4
        %vm427 = vcmask 277504
        %v428 = vsel %vm427, %v426, %v425
        %v431 = vmul.f32 %v294, %v428
        %v432 = vmul.f32 %v319, %v426
        %v434 = vcombine.high %v318, %v318
        %v438 = vcombine.low %v348, %v348
        %v439 = vcombine.low %v349, %v349
        %440 = vrot.lane.b32.xlu0 %v438, 127
        %v441 = vpop.permute.xlu0 %440
        %442 = vrot.lane.b32.xlu0 %v348, 127
        %v443 = vpop.permute.xlu0 %442
        %444 = vrot.lane.b32.xlu0 %v439, 127
        %v445 = vpop.permute.xlu0 %444
        %vm446 = vcmask 1039360
        %v447 = vsel %vm446, %v441, %v443
        %v448 = vsel %vm446, %v443, %v445
        %v453 = vcombine.high %v378, %v378
        %454 = vrot.lane.b32.xlu0 %v378, 126
        %v455 = vpop.permute.xlu0 %454
        %456 = vrot.lane.b32.xlu0 %v453, 126
        %v457 = vpop.permute.xlu0 %456
        %458 = vrot.lane.b32.xlu0 %v379, 126
        %v459 = vpop.permute.xlu0 %458
        %vm460 = vcmask 1031168
        %v461 = vsel %vm460, %v455, %v457
        %v462 = vsel %vm460, %v457, %v459
        %v467 = vcombine.low %v387, %v387
        %v468 = vcombine.low %v388, %v388
        %469 = vrot.lane.b32.xlu0 %v467, 112
        %v470 = vpop.permute.xlu0 %469
        %471 = vrot.lane.b32.xlu0 %v387, 112
        %v472 = vpop.permute.xlu0 %471
        %473 = vrot.lane.b32.xlu0 %v468, 112
        %v474 = vpop.permute.xlu0 %473
        %vm475 = vcmask 916480
        %v476 = vsel %vm475, %v470, %v472
        %v477 = vsel %vm475, %v472, %v474
        %v482 = vcombine.high %v395, %v395
        %483 = vrot.lane.b32.xlu0 %v395, 111
        %v484 = vpop.permute.xlu0 %483
        %485 = vrot.lane.b32.xlu0 %v482, 111
        %v486 = vpop.permute.xlu0 %485
        %487 = vrot.lane.b32.xlu0 %v396, 111
        %v488 = vpop.permute.xlu0 %487
        %vm489 = vcmask 908288
        %v490 = vsel %vm489, %v484, %v486
        %v491 = vsel %vm489, %v486, %v488
        %v496 = vcombine.low %v404, %v404
        %v497 = vcombine.low %v405, %v405
        %498 = vrot.lane.b32.xlu0 %v496, 110
        %v499 = vpop.permute.xlu0 %498
        %500 = vrot.lane.b32.xlu0 %v404, 110
        %v501 = vpop.permute.xlu0 %500
        %502 = vrot.lane.b32.xlu0 %v497, 110
        %v503 = vpop.permute.xlu0 %502
        %vm504 = vcmask 900096
        %v505 = vsel %vm504, %v499, %v501
        %v506 = vsel %vm504, %v501, %v503
        %v511 = vcombine.high %v413, %v413
        %512 = vrot.lane.b32.xlu0 %v413, 96
        %v513 = vpop.permute.xlu0 %512
        %514 = vrot.lane.b32.xlu0 %v511, 96
        %v515 = vpop.permute.xlu0 %514
        %516 = vrot.lane.b32.xlu0 %v414, 96
        %v517 = vpop.permute.xlu0 %516
        %vm518 = vcmask 785408
        %v519 = vsel %vm518, %v513, %v515
        %v520 = vsel %vm518, %v515, %v517
        %v525 = vcombine.low %v422, %v422
        %v526 = vcombine.low %v423, %v423
        %527 = vrot.lane.b32.xlu0 %v525, 95
        %v528 = vpop.permute.xlu0 %527
        %529 = vrot.lane.b32.xlu0 %v422, 95
        %v530 = vpop.permute.xlu0 %529
        %531 = vrot.lane.b32.xlu0 %v526, 95
        %v532 = vpop.permute.xlu0 %531
        %vm533 = vcmask 777216
        %v534 = vsel %vm533, %v528, %v530
        %v535 = vsel %vm533, %v530, %v532
        %v540 = vcombine.high %v431, %v431
        %541 = vrot.lane.b32.xlu0 %v431, 94
        %v542 = vpop.permute.xlu0 %541
        %543 = vrot.lane.b32.xlu0 %v540, 94
        %v544 = vpop.permute.xlu0 %543
        %545 = vrot.lane.b32.xlu0 %v432, 94
        %v546 = vpop.permute.xlu0 %545
        %vm547 = vcmask 769024
        %v548 = vsel %vm547, %v542, %v544
        %v549 = vsel %vm547, %v544, %v546
        %vm550 = vcmask 1043456
        %v551 = vsel %vm550, %v318, %v447
        %v552 = vsel %vm550, %v434, %v448
        %v553 = vsel %vm550, %v461, %v476
        %v554 = vsel %vm550, %v462, %v477
        %v555 = vsel %vm550, %v490, %v505
        %v556 = vsel %vm550, %v491, %v506
        %v557 = vsel %vm550, %v519, %v534
        %v558 = vsel %vm550, %v520, %v535
        %v560 = vsel %vm287, %v293, 0
        %v562 = vsel %vm550, %v548, 0
        %v564 = vsel %vm550, %v549, 0
        %566 = vmatprep.subr.mxu0 %v552
        %567 = vmatpush1.msra.mxu0 %v551
        %568 = vmatprep.subr.mxu0 %v554
        %569 = vmatpush1.msra.mxu0 %v553
        %570 = vmatprep.subr.mxu0 %v556
        %571 = vmatpush1.msra.mxu0 %v555
        %572 = vmatprep.subr.mxu0 %v558
        %573 = vmatpush1.msra.mxu0 %v557
        %574 = vmatprep.subr.mxu0 %v564
        %575 = vmatpush1.msra.mxu0 %v562
        %576 = vmatprep.subr.mxu0 0.0
        %577 = vmatpush1.msra.mxu0 0.0
        %578 = vmatprep.subr.mxu0 0.0
        %579 = vmatpush1.msra.mxu0 0.0
        %580 = vmatprep.subr.mxu0 0.0
        %581 = vmatpush1.msra.mxu0 0.0
        %582 = vmatprep.subr.mxu0 0.0
        %583 = vmatpush1.msra.mxu0 0.0
        %584 = vmatprep.subr.mxu0 0.0
        %585 = vmatpush1.msra.mxu0 0.0
        %586 = vmatprep.subr.mxu0 0.0
        %587 = vmatpush1.msra.mxu0 0.0
        %588 = vmatprep.subr.mxu0 0.0
        %589 = vmatpush1.msra.mxu0 0.0
        %590 = vmatprep.subr.mxu0 0.0
        %591 = vmatpush1.msra.mxu0 0.0
        %592 = vmatprep.subr.mxu0 0.0
        %593 = vmatpush1.msra.mxu0 0.0
        %594 = vmatprep.subr.mxu0 0.0
        %595 = vmatpush1.msra.mxu0 0.0
        %596 = vmatprep.subr.mxu0 0.0
        %597 = vmatpush1.msra.mxu0 0.0
        %598 = vmatprep.subr.mxu0 0.0
        %599 = vmatpush1.msra.mxu0 0.0
        %600 = vmatprep.subr.mxu0 0.0
        %601 = vmatpush1.msra.mxu0 0.0
        %602 = vmatprep.subr.mxu0 0.0
        %603 = vmatpush1.msra.mxu0 0.0
        %604 = vmatprep.subr.mxu0 0.0
        %605 = vmatpush1.msra.mxu0 0.0
        %606 = vmatprep.subr.mxu0 0.0
        %607 = vmatpush1.msra.mxu0 0.0
        %608 = vmatprep.subr.mxu0 0.0
        %609 = vmatpush1.msra.mxu0 0.0
        %610 = vmatprep.subr.mxu0 0.0
        %611 = vmatpush1.msra.mxu0 0.0
        %612 = vmatprep.subr.mxu0 0.0
        %613 = vmatpush1.msra.mxu0 0.0
        %614 = vmatprep.subr.mxu0 0.0
        %615 = vmatpush1.msra.mxu0 0.0
        %616 = vmatprep.subr.mxu0 0.0
        %617 = vmatpush1.msra.mxu0 0.0
        %618 = vmatprep.subr.mxu0 0.0
        %619 = vmatpush1.msra.mxu0 0.0
        %620 = vmatprep.subr.mxu0 0.0
        %621 = vmatpush1.msra.mxu0 0.0
        %622 = vmatprep.subr.mxu0 0.0
        %623 = vmatpush1.msra.mxu0 0.0
        %624 = vmatprep.subr.mxu0 0.0
        %625 = vmatpush1.msra.mxu0 0.0
        %626 = vmatprep.subr.mxu0 0.0
        %627 = vmatpush1.msra.mxu0 0.0
        %628 = vmatprep.subr.mxu0 0.0
        %629 = vmatpush1.msra.mxu0 0.0
        %630 = vmatprep.mubr.f32.mxu0 0.0
        %631 = vmatmul.mubr.f32.gmra.mrb[0].mxu0 %v560
        %v632 = vpop.f32.mrb[0].mxu0
        %v633 = vadd.f32 0.0, %v632
        %v634 = vpop.f32.mrb[0].mxu0
        %v635 = vadd.f32 0.0, %v634
        %636 = vdwg.mxu0
        %637 = vst [vmem:[%s257] sm:$0xff] %v633
        %638 = vst [vmem:[%s257 + $0x8] sm:$0xff] %v635
        %s639 = sand.u32 %s124, 1
        %s640 = scalar_lea.sflag [#allocation5], %s639
        %s641 = sand.u32 %s124, 1
        %s642 = smul.addr %s641, 16
        %s643 = scalar_lea.vmem [#allocation9], %s642
        // Predicated region
        $region49: #{tpu_custom_call.1} parent=35 // pred_check
          %p644 = pneg %p134
        $region50: #{tpu_custom_call.1} parent=35 // pred_check_branch
          %646 = sbr.rel (%p644) target = $region52
        $region51: #{tpu_custom_call.1} parent=35 // pred_region
          %s648 = ssub.s32 256, 256
          %649 = vsyncadd %s640, %s648
          %s650 = smul.addr %s22, 2
          %s651 = smul.addr %s650, 128
          %s652 = scalar_lea.hbm %s4, %s651
          %s654 = sshll.u32 %s643, 4
          %s655 = int_to_ptr.vmem [resolvable:$true] %s654
          %657 = dma.vmem_to_hbm [thread:$0]  %s655, 256, %s652, %s640
        $region52: #{tpu_custom_call.1} parent=35 // pred_fallthru
          _
      $region36: #{tpu_custom_call.1} parent=5 // pred_fallthru
        _
      %p658 = scmp.le.s32.totalorder 2, %s17
      // Predicated region
      $region53: #{tpu_custom_call.1} parent=5 // pred_check
        %p659 = pneg %p658
      $region54: #{tpu_custom_call.1} parent=5 // pred_check_branch
        %661 = sbr.rel (%p659) target = $region56
      $region55: #{tpu_custom_call.1} parent=5 // pred_region
        %s662 = ssub.s32 %s17, 2
        // Predicated region
        $region57: #{tpu_custom_call.1} parent=55 // pred_check
          %p663 = pneg %p140
        $region58: #{tpu_custom_call.1} parent=55 // pred_check_branch
          %665 = sbr.rel (%p663) target = $region60
        $region59: #{tpu_custom_call.1} parent=55 // pred_region
          %s666 = sand.u32 %s125, 1
          %s667 = scalar_lea.sflag [#allocation5], %s666
          %s668 = sand.u32 %s125, 1
          %s669 = smul.addr %s668, 16
          %s670 = scalar_lea.vmem [#allocation9], %s669
          %671 = dma.done %s667, 256
        $region60: #{tpu_custom_call.1} parent=55 // pred_fallthru
          _
      $region56: #{tpu_custom_call.1} parent=5 // pred_fallthru
        _
    $region6: #{tpu_custom_call.1} parent=1 // loop_footer
      %s21 = sadd.s32 1, %s17
    $region7: #{tpu_custom_call.1} parent=1 // loop_footer_branch
      %16 = sbr.rel target = $region3
    $region8: #{tpu_custom_call.1} parent=1 // loop_exit
      _
    %672 = vsyncpa [#allocation4], 1
    %s673 = scalar_lea.sflag [#allocation4], 1
    %674 = vsyncpa %s673, 1
    %675 = vsyncpa [#allocation7], 1
    %676 = vsyncpa [#allocation5], 1
    %s677 = scalar_lea.sflag [#allocation5], 1
    %678 = vsyncpa %s677, 1

</llo_original>
